<compile_context>
chip_gen: v6e
topology: v6e:2x2x1
jax: 0.10.0
libtpu: 0.0.40
codegen_flags: <defaults>
</compile_context>

<pallas_src>
import jax
import jax.numpy as jnp
from jax import lax
from jax.experimental import pallas as pl
from jax.experimental.pallas import tpu as pltpu


def attention_kernel(e_ref, w_ref, b_ref, ot_ref):
    # e_ref : (TB, E_node)     batch tile (sublanes = batch rows, lanes = features)
    # w_ref : (A_node, E_node) torch nn.Linear layout, resident across grid steps
    # b_ref : (A_node, 1)      resident across grid steps
    # ot_ref: (A_node, TB)     transposed, lane-dense output block
    e = e_ref[...]
    w = w_ref[...]

    # (A_node, TB) = W @ E.T : contract the feature dim of both operands on the
    # MXU with f32 accumulation.  Producing the transposed result directly keeps
    # the batch dim on the lanes (dense stores) with zero extra data movement.
    y = lax.dot_general(
        w, e,
        dimension_numbers=(((1,), (1,)), ((), ())),
        preferred_element_type=jnp.float32,
    )
    y = y + b_ref[...]                      # broadcast (A_node, 1) across lanes
    t = jnp.tanh(y)                         # EUP transcendental

    a_node = t.shape[0]
    if a_node == 2:
        # Exact 2-class softmax identity (torch dim=1 == this sublane axis):
        #   p0 = sigmoid(t0 - t1) = 0.5 * (1 + tanh((t0 - t1) / 2)),  p1 = 1 - p0
        # Single EUP tanh; no cross-lane reductions, no divide.
        d = t[0:1, :] - t[1:2, :]
        p0 = 0.5 * (1.0 + jnp.tanh(0.5 * d))
        p1 = 1.0 - p0
        ot_ref[...] = jnp.concatenate([p0, p1], axis=0).astype(ot_ref.dtype)
    else:
        # Generic stable softmax over the class (sublane) axis.
        m = jnp.max(t, axis=0, keepdims=True)
        p = jnp.exp(t - m)
        l = jnp.sum(p, axis=0, keepdims=True)
        ot_ref[...] = (p * pl.reciprocal(l)).astype(ot_ref.dtype)


def attention_net_forward(E, weight, bias, *, batch_tile=4096, min_pallas_rows=1024):
    """Forward pass of Attention_Net.

    E: (B, E_node) f32; weight: (A_node, E_node) torch layout; bias: (A_node,).
    Returns (B, A_node) softmax attention weights.
    """
    B, E_node = E.shape
    A_node = weight.shape[0]

    # Tiny-B fast path: a Pallas launch + HBM<->VMEM DMA is pure overhead for a
    # few hundred bytes; let XLA fuse matmul+tanh+softmax into one tiny fusion.
    if B < min_pallas_rows:
        y = E @ weight.T + bias
        return jax.nn.softmax(jnp.tanh(y), axis=1)

    # Batch tile: full batch if it fits, else a lane-aligned (multiple of 128)
    # tile so the transposed output block stays dense and the grid pipelines.
    if B <= batch_tile:
        TB = B
    else:
        TB = max(128, (batch_tile // 128) * 128)
    grid = (pl.cdiv(B, TB),)

    bias2 = bias.reshape(A_node, 1)         # column vector for the transposed layout

    out_t = pl.pallas_call(
        attention_kernel,
        out_shape=jax.ShapeDtypeStruct((A_node, B), E.dtype),
        grid_spec=pltpu.PrefetchScalarGridSpec(
            num_scalar_prefetch=0,
            grid=grid,
            in_specs=[
                pl.BlockSpec((TB, E_node), lambda i: (i, 0)),       # batch tile
                pl.BlockSpec((A_node, E_node), lambda i: (0, 0)),   # resident weight
                pl.BlockSpec((A_node, 1), lambda i: (0, 0)),        # resident bias
            ],
            out_specs=pl.BlockSpec((A_node, TB), lambda i: (0, i)), # lane-dense output
        ),
        compiler_params=pltpu.CompilerParams(
            dimension_semantics=("parallel",)),   # independent batch tiles
    )(E, weight, bias2)

    # Cheap (8 B/row) transpose back to the torch-facing (B, A_node) layout.
    return out_t.T


def reference_forward(E, weight, bias):
    y = E @ weight.T + bias
    return jax.nn.softmax(jnp.tanh(y), axis=1)


if __name__ == "__main__":
    # Shapes consistent with the module defaults: E_node = 32, A_node = 2.
    E_node, A_node = 32, 2
    key = jax.random.PRNGKey(0)
    ke1, ke2, kw, kb = jax.random.split(key, 4)

    bound = 1.0 / (E_node ** 0.5)
    weight = jax.random.uniform(kw, (A_node, E_node), minval=-bound, maxval=bound,
                                dtype=jnp.float32)
    bias = jax.random.uniform(kb, (A_node,), minval=-bound, maxval=bound,
                              dtype=jnp.float32)

    # --- Test 1: module-nominal batch (B=2), forced through the Pallas kernel.
    E1 = jax.random.normal(ke1, (2, E_node), dtype=jnp.float32)
    out1 = jax.block_until_ready(
        attention_net_forward(E1, weight, bias, min_pallas_rows=0))
    ref1 = reference_forward(E1, weight, bias)
    assert out1.shape == (2, A_node)
    assert jnp.allclose(out1, ref1, atol=1e-5, rtol=1e-5), "B=2 mismatch vs reference"
    assert jnp.allclose(jnp.sum(out1, axis=1), jnp.ones((2,)), atol=1e-5)

    # --- Test 2: multi-tile path (3 grid steps of 128 rows) exercising the
    #             lane-dense transposed output block.
    E2 = jax.random.normal(ke2, (384, E_node), dtype=jnp.float32)
    out2 = jax.block_until_ready(
        attention_net_forward(E2, weight, bias, batch_tile=128, min_pallas_rows=0))
    ref2 = reference_forward(E2, weight, bias)
    assert out2.shape == (384, A_node)
    assert jnp.allclose(out2, ref2, atol=1e-5, rtol=1e-5), "tiled mismatch vs reference"
    assert jnp.allclose(jnp.sum(out2, axis=1), jnp.ones((384,)), atol=1e-5)

    # --- Test 3: tiny-B fast path (bypasses the Pallas launch entirely).
    out3 = jax.block_until_ready(attention_net_forward(E1, weight, bias))
    assert jnp.allclose(out3, ref1, atol=1e-5, rtol=1e-5)

    # TODO(synk): dropout_attention is stored in __init__ but never applied in
    # the reference forward, so it is intentionally not implemented here.
    print("KERNEL_OK")
</pallas_src>

<mosaic_0001>
module attributes {stable_mosaic.version = 11 : i64} {
  func.func @attention_kernel(%arg0: i32, %arg1: memref<2x32xf32, #tpu.memory_space<vmem>>, %arg2: memref<2x32xf32, #tpu.memory_space<vmem>>, %arg3: memref<2x1xf32, #tpu.memory_space<vmem>>, %arg4: memref<2x2xf32, #tpu.memory_space<vmem>>) attributes {dimension_semantics = [#tpu.dimension_semantics<parallel>], iteration_bounds = array<i64: 1>, scalar_prefetch = 0 : i64, scratch_operands = 0 : i64, tpu.core_type = #tpu.core_type<tc>, window_params = [{transform_indices = @transform_0, window_bounds = array<i64: 2, 32>}, {pipeline_mode = #tpu.pipeline_mode<synchronous>, transform_indices = @transform_1, window_bounds = array<i64: 2, 32>}, {pipeline_mode = #tpu.pipeline_mode<synchronous>, transform_indices = @transform_2, window_bounds = array<i64: 2, 1>}, {transform_indices = @transform_3, window_bounds = array<i64: 2, 2>}]} {
    %c0 = arith.constant 0 : index
    %c0_0 = arith.constant 0 : index
    %0 = vector.load %arg1[%c0, %c0_0] : memref<2x32xf32, #tpu.memory_space<vmem>>, vector<2x32xf32>
    %c0_1 = arith.constant 0 : index
    %c0_2 = arith.constant 0 : index
    %1 = vector.load %arg2[%c0_1, %c0_2] : memref<2x32xf32, #tpu.memory_space<vmem>>, vector<2x32xf32>
    %cst = arith.constant dense<0.000000e+00> : vector<2x2xf32>
    %2 = tpu.matmul %1, %0, %cst {dimension_numbers = #tpu.dot_dimension_numbers<[1], [1], [0], [0], [0, 0, 1, 0], [], []>} : vector<2x32xf32>, vector<2x32xf32>, vector<2x2xf32> -> vector<2x2xf32>
    %c0_3 = arith.constant 0 : index
    %c0_4 = arith.constant 0 : index
    %3 = vector.load %arg3[%c0_3, %c0_4] : memref<2x1xf32, #tpu.memory_space<vmem>>, vector<2x1xf32>
    %4 = vector.broadcast %3 : vector<2x1xf32> to vector<2x2xf32>
    %5 = arith.addf %2, %4 : vector<2x2xf32>
    %6 = math.tanh %5 : vector<2x2xf32>
    %7 = vector.extract_strided_slice %6 {offsets = [0, 0], sizes = [1, 2], strides = [1, 1]} : vector<2x2xf32> to vector<1x2xf32>
    %8 = vector.extract_strided_slice %6 {offsets = [1, 0], sizes = [1, 2], strides = [1, 1]} : vector<2x2xf32> to vector<1x2xf32>
    %9 = arith.subf %7, %8 : vector<1x2xf32>
    %cst_5 = arith.constant 5.000000e-01 : f32
    %10 = vector.broadcast %cst_5 : f32 to vector<1x2xf32>
    %11 = arith.mulf %10, %9 : vector<1x2xf32>
    %12 = math.tanh %11 : vector<1x2xf32>
    %cst_6 = arith.constant 1.000000e+00 : f32
    %13 = vector.broadcast %cst_6 : f32 to vector<1x2xf32>
    %14 = arith.addf %13, %12 : vector<1x2xf32>
    %cst_7 = arith.constant 5.000000e-01 : f32
    %15 = vector.broadcast %cst_7 : f32 to vector<1x2xf32>
    %16 = arith.mulf %15, %14 : vector<1x2xf32>
    %cst_8 = arith.constant 1.000000e+00 : f32
    %17 = vector.broadcast %cst_8 : f32 to vector<1x2xf32>
    %18 = arith.subf %17, %16 : vector<1x2xf32>
    %19 = tpu.concatenate %16, %18 in 0 : vector<1x2xf32>, vector<1x2xf32> -> vector<2x2xf32>
    %c0_9 = arith.constant 0 : index
    %c0_10 = arith.constant 0 : index
    %20 = vector.load %arg4[%c0_9, %c0_10] : memref<2x2xf32, #tpu.memory_space<vmem>>, vector<2x2xf32>
    tpu.vector_store %arg4[%c0_9, %c0_10], %19 {strides = array<i32>} : memref<2x2xf32, #tpu.memory_space<vmem>>, vector<2x2xf32>,
    return
  }
  func.func @transform_0(%arg0: i32) -> (i32, i32) {
    %c0_i32 = arith.constant 0 : i32
    %c0_i32_0 = arith.constant 0 : i32
    return %arg0, %c0_i32 : i32, i32
  }
  func.func @transform_1(%arg0: i32) -> (i32, i32) {
    %c0_i32 = arith.constant 0 : i32
    %c0_i32_0 = arith.constant 0 : i32
    %c0_i32_1 = arith.constant 0 : i32
    return %c0_i32, %c0_i32_0 : i32, i32
  }
  func.func @transform_2(%arg0: i32) -> (i32, i32) {
    %c0_i32 = arith.constant 0 : i32
    %c0_i32_0 = arith.constant 0 : i32
    %c0_i32_1 = arith.constant 0 : i32
    return %c0_i32, %c0_i32_0 : i32, i32
  }
  func.func @transform_3(%arg0: i32) -> (i32, i32) {
    %c0_i32 = arith.constant 0 : i32
    %c0_i32_0 = arith.constant 0 : i32
    return %c0_i32, %arg0 : i32, i32
  }
}

</mosaic_0001>

<llo_original>
// kernel: tpu_custom_call.1
$region0: #{tpu_custom_call.1}
  #allocation0 [shape = 'u32[]', space=smem, size = 0x4, offset = 0x4, fixed_abs, tag = 'smem constant byte address 0x4 - core index']
  #allocation1 [shape = 'u32[144,128]{1,0:T(1,128)}', space=vmem, size = 0x12000, scoped, tag = 'internal scratch']
  %s0 = inlined_call_operand.vmem [shape: f32[2,32], index: 0, kind: input, shape index: {}]
  %s1 = inlined_call_operand.vmem [shape: f32[2,32], index: 1, kind: input, shape index: {}]
  %s2 = inlined_call_operand.vmem [shape: f32[2,1], index: 2, kind: input, shape index: {}]
  %s3 = inlined_call_operand.hbm [shape: f32[2,2], index: 3, kind: output, shape index: {}]
  %s4 = sld [smem:[#allocation0]]
  $region22: #{tpu_custom_call.1} parent=0
    _
  %s6 = ssub.s32 1, %s4
  %s7 = scalar_select 0, %s6, %s4
  $region1: #{tpu_custom_call.1} parent=0
    #allocation2 [shape = 'u8[1024]{0}', space=vmem, size = 0x400, scoped, tag = 'output window, operand 0, single buffered']
    #allocation3 [shape = 's32[1]{0}', space=sflag, size = 0x4, scoped, tag = 'scoped memory for tpu_custom_call.1']
    %8 = vsyncpa [#allocation3], 0
    // Predicated region
    $region2: #{tpu_custom_call.1} parent=1 // pred_check
      _
    $region3: #{tpu_custom_call.1} parent=1 // pred_check_branch
      %10 = sbr.rel (0) target = $region5
    $region4: #{tpu_custom_call.1} parent=1 // pred_region
      _
    $region5: #{tpu_custom_call.1} parent=1 // pred_fallthru
      _
    // Predicated region
    $region6: #{tpu_custom_call.1} parent=1 // pred_check
      _
    $region7: #{tpu_custom_call.1} parent=1 // pred_check_branch
      %12 = sbr.rel (0) target = $region9
    $region8: #{tpu_custom_call.1} parent=1 // pred_region
      _
    $region9: #{tpu_custom_call.1} parent=1 // pred_fallthru
      _
    // Predicated region
    $region10: #{tpu_custom_call.1} parent=1 // pred_check
      _
    $region11: #{tpu_custom_call.1} parent=1 // pred_check_branch
      %14 = sbr.rel (0) target = $region13
    $region12: #{tpu_custom_call.1} parent=1 // pred_region
      _
    $region13: #{tpu_custom_call.1} parent=1 // pred_fallthru
      _
    %v15 = vld [vmem:[%s0] sm:$0x3]
    %v16 = vld [vmem:[%s1] sm:$0x3]
    %v17 = vld [vmem:[%s2] sm:$0x3]
    %19 = vset.pattern.permute.xlu0 0
    %20 = vperm.xlu0 %19, %v17
    %v21 = vpop.permute.xlu0 %20
    %vm23 = vcmask 261120
    %v25 = vsel %vm23, %v16, 0
    %v28 = vsel %vm23, %v15, 0
    %30 = vmatprep.subr.mxu0 0.0
    %31 = vmatpush1.xpose.msra.mxu0 0.0
    %32 = vmatprep.subr.mxu0 0.0
    %33 = vmatpush1.xpose.msra.mxu0 0.0
    %34 = vmatprep.subr.mxu0 0.0
    %35 = vmatpush1.xpose.msra.mxu0 0.0
    %36 = vmatprep.subr.mxu0 0.0
    %37 = vmatpush1.xpose.msra.mxu0 0.0
    %38 = vmatprep.subr.mxu0 0.0
    %39 = vmatpush1.xpose.msra.mxu0 0.0
    %40 = vmatprep.subr.mxu0 0.0
    %41 = vmatpush1.xpose.msra.mxu0 0.0
    %42 = vmatprep.subr.mxu0 0.0
    %43 = vmatpush1.xpose.msra.mxu0 0.0
    %44 = vmatprep.subr.mxu0 0.0
    %45 = vmatpush1.xpose.msra.mxu0 0.0
    %46 = vmatprep.subr.mxu0 0.0
    %47 = vmatpush1.xpose.msra.mxu0 0.0
    %48 = vmatprep.subr.mxu0 0.0
    %49 = vmatpush1.xpose.msra.mxu0 0.0
    %50 = vmatprep.subr.mxu0 0.0
    %51 = vmatpush1.xpose.msra.mxu0 0.0
    %52 = vmatprep.subr.mxu0 0.0
    %53 = vmatpush1.xpose.msra.mxu0 0.0
    %54 = vmatprep.subr.mxu0 0.0
    %55 = vmatpush1.xpose.msra.mxu0 0.0
    %56 = vmatprep.subr.mxu0 0.0
    %57 = vmatpush1.xpose.msra.mxu0 0.0
    %58 = vmatprep.subr.mxu0 0.0
    %59 = vmatpush1.xpose.msra.mxu0 0.0
    %60 = vmatprep.subr.mxu0 0.0
    %61 = vmatpush1.xpose.msra.mxu0 %v28
    %62 = vmatprep.subr.mxu0 0.0
    %63 = vmatpush2.xpose.msra.mxu0 0.0
    %64 = vmatprep.subr.mxu0 0.0
    %65 = vmatpush2.xpose.msra.mxu0 0.0
    %66 = vmatprep.subr.mxu0 0.0
    %67 = vmatpush2.xpose.msra.mxu0 0.0
    %68 = vmatprep.subr.mxu0 0.0
    %69 = vmatpush2.xpose.msra.mxu0 0.0
    %70 = vmatprep.subr.mxu0 0.0
    %71 = vmatpush2.xpose.msra.mxu0 0.0
    %72 = vmatprep.subr.mxu0 0.0
    %73 = vmatpush2.xpose.msra.mxu0 0.0
    %74 = vmatprep.subr.mxu0 0.0
    %75 = vmatpush2.xpose.msra.mxu0 0.0
    %76 = vmatprep.subr.mxu0 0.0
    %77 = vmatpush2.xpose.msra.mxu0 0.0
    %78 = vmatprep.subr.mxu0 0.0
    %79 = vmatpush2.xpose.msra.mxu0 0.0
    %80 = vmatprep.subr.mxu0 0.0
    %81 = vmatpush2.xpose.msra.mxu0 0.0
    %82 = vmatprep.subr.mxu0 0.0
    %83 = vmatpush2.xpose.msra.mxu0 0.0
    %84 = vmatprep.subr.mxu0 0.0
    %85 = vmatpush2.xpose.msra.mxu0 0.0
    %86 = vmatprep.subr.mxu0 0.0
    %87 = vmatpush2.xpose.msra.mxu0 0.0
    %88 = vmatprep.subr.mxu0 0.0
    %89 = vmatpush2.xpose.msra.mxu0 0.0
    %90 = vmatprep.subr.mxu0 0.0
    %91 = vmatpush2.xpose.msra.mxu0 0.0
    %92 = vmatprep.subr.mxu0 0.0
    %93 = vmatpush2.xpose.msra.mxu0 0.0
    %94 = vmatprep.mubr.f32.mxu0 0.0
    %95 = vmatmul.mubr.f32.gmra.mxu0 %v25
    %v96 = vpop.f32.mrf.mxu0
    %v97 = vadd.f32 %v21, %v96
    %v98 = vpop.f32.mrf.mxu0
    %99 = vdwg.mxu0
    %v100 = vtanh.pop %v97
    %v102 = vrot.slane %v100, 1
    %v104 = vsub.f32 %v100, %v102
    %v105 = vmul.f32 %v104, 0.5
    %v106 = vtanh.pop %v105
    %v107 = vadd.f32 %v106, 1.0
    %v108 = vmul.f32 %v107, 0.5
    %v109 = vsub.f32 1.0, %v108
    %v111 = vrot.slane %v109, 7
    %vm113 = vcmask 1040384
    %v114 = vsel %vm113, %v108, %v111
    %vm115 = vcmask 9216
    %116 = vst.msk [vmem:[#allocation2] sm:$0x3] %vm115, %v114
    // Predicated region
    $region14: #{tpu_custom_call.1} parent=1 // pred_check
      _
    $region15: #{tpu_custom_call.1} parent=1 // pred_check_branch
      %118 = sbr.rel (0) target = $region17
    $region16: #{tpu_custom_call.1} parent=1 // pred_region
      %s120 = ssub.s32 32, 32
      %121 = vsyncadd [#allocation3], %s120
      %s123 = sshll.u32 [#allocation2], 4
      %s124 = int_to_ptr.vmem [resolvable:$true] %s123
      %126 = dma.vmem_to_hbm [thread:$0]  %s124, 32, %s3, [#allocation3]
    $region17: #{tpu_custom_call.1} parent=1 // pred_fallthru
      _
    // Predicated region
    $region18: #{tpu_custom_call.1} parent=1 // pred_check
      _
    $region19: #{tpu_custom_call.1} parent=1 // pred_check_branch
      %128 = sbr.rel (0) target = $region21
    $region20: #{tpu_custom_call.1} parent=1 // pred_region
      %129 = dma.done [#allocation3], 32
    $region21: #{tpu_custom_call.1} parent=1 // pred_fallthru
      _
    %130 = vsyncpa [#allocation3], 1

</llo_original>
